<compile_context>
chip_gen: v7x
topology: tpu7x:2x2x1
jax: 0.10.0
libtpu: 0.0.40
codegen_flags: <defaults>
</compile_context>

<pallas_src>
import jax
import jax.numpy as jnp
from jax.experimental import pallas as pl
from jax.experimental.pallas import tpu as pltpu

LANE = 128  # TPU lane width


def _round_up(x, m):
    return ((x + m - 1) // m) * m


def qnet_kernel(x_ref,
                w1_ref, b1_ref,
                w2_ref, b2_ref,
                w3_ref, b3_ref,
                w4_ref, b4_ref,
                o_ref):
    # Layer 1: full f32 (preserves state precision; K = state_size is tiny).
    x = x_ref[...]
    h = jnp.dot(x, w1_ref[...], preferred_element_type=jnp.float32) + b1_ref[...]
    h = jnp.maximum(h.astype(jnp.bfloat16), 0.0)

    # Layers 2-3: bf16 operands, f32 MXU accumulation, f32 bias add,
    # bf16 ReLU (identical result; cheaper on v6e/v7x bf16 VALUs).
    h = jnp.dot(h, w2_ref[...], preferred_element_type=jnp.float32) + b2_ref[...]
    h = jnp.maximum(h.astype(jnp.bfloat16), 0.0)

    h = jnp.dot(h, w3_ref[...], preferred_element_type=jnp.float32) + b3_ref[...]
    h = jnp.maximum(h.astype(jnp.bfloat16), 0.0)

    # Layer 4: narrow (TB, action_size) f32 output block — no lane padding.
    out = jnp.dot(h, w4_ref[...], preferred_element_type=jnp.float32) + b4_ref[...]
    o_ref[...] = out.astype(o_ref.dtype)


def qnetwork_alpha_forward(state, params, *, block_b=4096):
    """state: [B, state_size] float32 -> [B, action_size] float32."""
    (w1, b1), (w2, b2), (w3, b3), (w4, b4) = params
    state = state.astype(jnp.float32)
    B, S = state.shape
    A = w4.shape[1]
    H1, H2, H3 = w1.shape[1], w2.shape[1], w3.shape[1]

    # --- Lane-dense hidden layers: zero-pad hidden widths to 128 multiples. ---
    H1p, H2p, H3p = (_round_up(h, LANE) for h in (H1, H2, H3))
    w1p = jnp.pad(w1, ((0, 0), (0, H1p - H1)))                             # f32
    b1p = jnp.pad(b1, ((0, 0), (0, H1p - H1)))
    w2p = jnp.pad(w2, ((0, H1p - H1), (0, H2p - H2))).astype(jnp.bfloat16)
    b2p = jnp.pad(b2, ((0, 0), (0, H2p - H2)))
    w3p = jnp.pad(w3, ((0, H2p - H2), (0, H3p - H3))).astype(jnp.bfloat16)
    b3p = jnp.pad(b3, ((0, 0), (0, H3p - H3)))
    w4p = jnp.pad(w4, ((0, H3p - H3), (0, 0))).astype(jnp.bfloat16)
    # Final layer output width stays action_size: no w4/b4 column padding.

    # --- Batch tiling (multiples of 16 for bf16 sublane packing). ---
    if B <= 16:
        TB = B                               # full-dim block; always legal
    else:
        TB = min(_round_up(block_b, 16), _round_up(B, 16))
        # v7x megacore: keep >= 2 grid steps when the batch is big enough so
        # "parallel" semantics can shard batch tiles across both TensorCores.
        if pl.cdiv(B, TB) < 2:
            TB = _round_up(pl.cdiv(B, 2), 16)
    grid = (pl.cdiv(B, TB),)    # ragged tail handled by Pallas block masking

    # VMEM budget: double-buffered x/out tiles + activation headroom; capped
    # below v7x's 64 MiB physical VMEM.
    hmax = max(H1p, H2p, H3p)
    vmem_bytes = (2 * TB * S * 4            # x tiles (f32, double-buffered)
                  + 2 * TB * A * 4          # out tiles (f32, double-buffered)
                  + 8 * TB * hmax * 4       # intermediates / accumulators
                  + 4 * 1024 * 1024)        # weights, biases, misc
    vmem_limit = int(min(max(vmem_bytes, 32 * 1024 * 1024), 48 * 1024 * 1024))

    def resident(arr):
        # Constant block index -> buffer stays VMEM-resident across grid steps.
        return pl.BlockSpec(arr.shape, lambda i: (0, 0))

    out = pl.pallas_call(
        qnet_kernel,
        out_shape=jax.ShapeDtypeStruct((B, A), jnp.float32),
        grid=grid,
        in_specs=[
            pl.BlockSpec((TB, S), lambda i: (i, 0)),   # x: tiled over batch
            resident(w1p), resident(b1p),
            resident(w2p), resident(b2p),
            resident(w3p), resident(b3p),
            resident(w4p), resident(b4),
        ],
        out_specs=pl.BlockSpec((TB, A), lambda i: (i, 0)),
        compiler_params=pltpu.CompilerParams(
            dimension_semantics=("parallel",),          # v7x: 2 TCs share batch
            vmem_limit_bytes=vmem_limit),
    )(state, w1p, b1p, w2p, b2p, w3p, b3p, w4p, b4)

    return out


def init_params(key, state_size, action_size,
                hidden_layer_1=128, hidden_layer_2=64, hidden_layer_3=16):
    """Deterministic init mimicking nn.Linear default: U(-1/sqrt(fan_in), ...).
    Weights stored [in, out]; biases stored [1, out] (2-D for TPU layout)."""
    dims = [state_size, hidden_layer_1, hidden_layer_2, hidden_layer_3, action_size]
    params = []
    for i in range(4):
        key, kw, kb = jax.random.split(key, 3)
        fan_in, fan_out = dims[i], dims[i + 1]
        bound = 1.0 / jnp.sqrt(jnp.float32(fan_in))
        w = jax.random.uniform(kw, (fan_in, fan_out), jnp.float32, -bound, bound)
        b = jax.random.uniform(kb, (1, fan_out), jnp.float32, -bound, bound)
        params.append((w, b))
    return params


def _reference_forward(state, params):
    (w1, b1), (w2, b2), (w3, b3), (w4, b4) = params
    h = jnp.maximum(state @ w1 + b1, 0.0)
    h = jnp.maximum(h @ w2 + b2, 0.0)
    h = jnp.maximum(h @ w3 + b3, 0.0)
    return h @ w4 + b4


if __name__ == "__main__":
    key = jax.random.PRNGKey(0)
    batch = 2
    state_size = 8
    action_size = 4

    key, k_state = jax.random.split(key)
    state = jax.random.normal(k_state, (batch, state_size), jnp.float32)

    params = init_params(key, state_size, action_size)

    out = qnetwork_alpha_forward(state, params)
    out = jax.block_until_ready(out)

    assert out.shape == (batch, action_size), out.shape
    assert out.dtype == jnp.float32, out.dtype

    # Correctness vs. pure-JAX f32 reference (layers 2-4 use bf16 operands
    # with f32 accumulation -> relaxed tolerance).
    ref = _reference_forward(state, params)
    assert jnp.allclose(out, ref, atol=5e-2, rtol=5e-2), (out, ref)

    print("KERNEL_OK")
</pallas_src>

<mosaic_0001>
module attributes {stable_mosaic.version = 11 : i64} {
  func.func @qnet_kernel(%arg0: i32, %arg1: memref<2x8xf32, #tpu.memory_space<vmem>>, %arg2: memref<8x128xf32, #tpu.memory_space<vmem>>, %arg3: memref<1x128xf32, #tpu.memory_space<vmem>>, %arg4: memref<128x128xbf16, #tpu.memory_space<vmem>>, %arg5: memref<1x128xf32, #tpu.memory_space<vmem>>, %arg6: memref<128x128xbf16, #tpu.memory_space<vmem>>, %arg7: memref<1x128xf32, #tpu.memory_space<vmem>>, %arg8: memref<128x4xbf16, #tpu.memory_space<vmem>>, %arg9: memref<1x4xf32, #tpu.memory_space<vmem>>, %arg10: memref<2x4xf32, #tpu.memory_space<vmem>>) attributes {dimension_semantics = [#tpu.dimension_semantics<parallel>], iteration_bounds = array<i64: 1>, scalar_prefetch = 0 : i64, scratch_operands = 0 : i64, tpu.core_type = #tpu.core_type<tc>, window_params = [{transform_indices = @transform_0, window_bounds = array<i64: 2, 8>}, {pipeline_mode = #tpu.pipeline_mode<synchronous>, transform_indices = @transform_1, window_bounds = array<i64: 8, 128>}, {pipeline_mode = #tpu.pipeline_mode<synchronous>, transform_indices = @transform_2, window_bounds = array<i64: 1, 128>}, {pipeline_mode = #tpu.pipeline_mode<synchronous>, transform_indices = @transform_3, window_bounds = array<i64: 128, 128>}, {pipeline_mode = #tpu.pipeline_mode<synchronous>, transform_indices = @transform_4, window_bounds = array<i64: 1, 128>}, {pipeline_mode = #tpu.pipeline_mode<synchronous>, transform_indices = @transform_5, window_bounds = array<i64: 128, 128>}, {pipeline_mode = #tpu.pipeline_mode<synchronous>, transform_indices = @transform_6, window_bounds = array<i64: 1, 128>}, {pipeline_mode = #tpu.pipeline_mode<synchronous>, transform_indices = @transform_7, window_bounds = array<i64: 128, 4>}, {pipeline_mode = #tpu.pipeline_mode<synchronous>, transform_indices = @transform_8, window_bounds = array<i64: 1, 4>}, {transform_indices = @transform_9, window_bounds = array<i64: 2, 4>}]} {
    %c0 = arith.constant 0 : index
    %c0_0 = arith.constant 0 : index
    %0 = vector.load %arg1[%c0, %c0_0] : memref<2x8xf32, #tpu.memory_space<vmem>>, vector<2x8xf32>
    %c0_1 = arith.constant 0 : index
    %c0_2 = arith.constant 0 : index
    %1 = vector.load %arg2[%c0_1, %c0_2] : memref<8x128xf32, #tpu.memory_space<vmem>>, vector<8x128xf32>
    %cst = arith.constant dense<0.000000e+00> : vector<2x128xf32>
    %2 = tpu.matmul %0, %1, %cst {dimension_numbers = #tpu.dot_dimension_numbers<[1], [0], [0], [1], [0, 0, 1, 1], [], []>} : vector<2x8xf32>, vector<8x128xf32>, vector<2x128xf32> -> vector<2x128xf32>
    %c0_3 = arith.constant 0 : index
    %c0_4 = arith.constant 0 : index
    %3 = vector.load %arg3[%c0_3, %c0_4] : memref<1x128xf32, #tpu.memory_space<vmem>>, vector<1x128xf32>
    %4 = vector.broadcast %3 : vector<1x128xf32> to vector<2x128xf32>
    %5 = arith.addf %2, %4 : vector<2x128xf32>
    %6 = arith.truncf %5 : vector<2x128xf32> to vector<2x128xbf16>
    %cst_5 = arith.constant 0.000000e+00 : bf16
    %7 = vector.broadcast %cst_5 : bf16 to vector<2x128xbf16>
    %8 = arith.maximumf %6, %7 : vector<2x128xbf16>
    %c0_6 = arith.constant 0 : index
    %c0_7 = arith.constant 0 : index
    %9 = vector.load %arg4[%c0_6, %c0_7] : memref<128x128xbf16, #tpu.memory_space<vmem>>, vector<128x128xbf16>
    %cst_8 = arith.constant dense<0.000000e+00> : vector<2x128xf32>
    %10 = tpu.matmul %8, %9, %cst_8 {dimension_numbers = #tpu.dot_dimension_numbers<[1], [0], [0], [1], [0, 0, 1, 1], [], []>} : vector<2x128xbf16>, vector<128x128xbf16>, vector<2x128xf32> -> vector<2x128xf32>
    %c0_9 = arith.constant 0 : index
    %c0_10 = arith.constant 0 : index
    %11 = vector.load %arg5[%c0_9, %c0_10] : memref<1x128xf32, #tpu.memory_space<vmem>>, vector<1x128xf32>
    %12 = vector.broadcast %11 : vector<1x128xf32> to vector<2x128xf32>
    %13 = arith.addf %10, %12 : vector<2x128xf32>
    %14 = arith.truncf %13 : vector<2x128xf32> to vector<2x128xbf16>
    %cst_11 = arith.constant 0.000000e+00 : bf16
    %15 = vector.broadcast %cst_11 : bf16 to vector<2x128xbf16>
    %16 = arith.maximumf %14, %15 : vector<2x128xbf16>
    %c0_12 = arith.constant 0 : index
    %c0_13 = arith.constant 0 : index
    %17 = vector.load %arg6[%c0_12, %c0_13] : memref<128x128xbf16, #tpu.memory_space<vmem>>, vector<128x128xbf16>
    %cst_14 = arith.constant dense<0.000000e+00> : vector<2x128xf32>
    %18 = tpu.matmul %16, %17, %cst_14 {dimension_numbers = #tpu.dot_dimension_numbers<[1], [0], [0], [1], [0, 0, 1, 1], [], []>} : vector<2x128xbf16>, vector<128x128xbf16>, vector<2x128xf32> -> vector<2x128xf32>
    %c0_15 = arith.constant 0 : index
    %c0_16 = arith.constant 0 : index
    %19 = vector.load %arg7[%c0_15, %c0_16] : memref<1x128xf32, #tpu.memory_space<vmem>>, vector<1x128xf32>
    %20 = vector.broadcast %19 : vector<1x128xf32> to vector<2x128xf32>
    %21 = arith.addf %18, %20 : vector<2x128xf32>
    %22 = arith.truncf %21 : vector<2x128xf32> to vector<2x128xbf16>
    %cst_17 = arith.constant 0.000000e+00 : bf16
    %23 = vector.broadcast %cst_17 : bf16 to vector<2x128xbf16>
    %24 = arith.maximumf %22, %23 : vector<2x128xbf16>
    %c0_18 = arith.constant 0 : index
    %c0_19 = arith.constant 0 : index
    %25 = vector.load %arg8[%c0_18, %c0_19] : memref<128x4xbf16, #tpu.memory_space<vmem>>, vector<128x4xbf16>
    %cst_20 = arith.constant dense<0.000000e+00> : vector<2x4xf32>
    %26 = tpu.matmul %24, %25, %cst_20 {dimension_numbers = #tpu.dot_dimension_numbers<[1], [0], [0], [1], [0, 0, 1, 1], [], []>} : vector<2x128xbf16>, vector<128x4xbf16>, vector<2x4xf32> -> vector<2x4xf32>
    %c0_21 = arith.constant 0 : index
    %c0_22 = arith.constant 0 : index
    %27 = vector.load %arg9[%c0_21, %c0_22] : memref<1x4xf32, #tpu.memory_space<vmem>>, vector<1x4xf32>
    %28 = vector.broadcast %27 : vector<1x4xf32> to vector<2x4xf32>
    %29 = arith.addf %26, %28 : vector<2x4xf32>
    %c0_23 = arith.constant 0 : index
    %c0_24 = arith.constant 0 : index
    %30 = vector.load %arg10[%c0_23, %c0_24] : memref<2x4xf32, #tpu.memory_space<vmem>>, vector<2x4xf32>
    tpu.vector_store %arg10[%c0_23, %c0_24], %29 {strides = array<i32>} : memref<2x4xf32, #tpu.memory_space<vmem>>, vector<2x4xf32>,
    return
  }
  func.func @transform_0(%arg0: i32) -> (i32, i32) {
    %c0_i32 = arith.constant 0 : i32
    %c0_i32_0 = arith.constant 0 : i32
    return %arg0, %c0_i32 : i32, i32
  }
  func.func @transform_1(%arg0: i32) -> (i32, i32) {
    %c0_i32 = arith.constant 0 : i32
    %c0_i32_0 = arith.constant 0 : i32
    %c0_i32_1 = arith.constant 0 : i32
    return %c0_i32, %c0_i32_0 : i32, i32
  }
  func.func @transform_2(%arg0: i32) -> (i32, i32) {
    %c0_i32 = arith.constant 0 : i32
    %c0_i32_0 = arith.constant 0 : i32
    %c0_i32_1 = arith.constant 0 : i32
    return %c0_i32, %c0_i32_0 : i32, i32
  }
  func.func @transform_3(%arg0: i32) -> (i32, i32) {
    %c0_i32 = arith.constant 0 : i32
    %c0_i32_0 = arith.constant 0 : i32
    %c0_i32_1 = arith.constant 0 : i32
    return %c0_i32, %c0_i32_0 : i32, i32
  }
  func.func @transform_4(%arg0: i32) -> (i32, i32) {
    %c0_i32 = arith.constant 0 : i32
    %c0_i32_0 = arith.constant 0 : i32
    %c0_i32_1 = arith.constant 0 : i32
    return %c0_i32, %c0_i32_0 : i32, i32
  }
  func.func @transform_5(%arg0: i32) -> (i32, i32) {
    %c0_i32 = arith.constant 0 : i32
    %c0_i32_0 = arith.constant 0 : i32
    %c0_i32_1 = arith.constant 0 : i32
    return %c0_i32, %c0_i32_0 : i32, i32
  }
  func.func @transform_6(%arg0: i32) -> (i32, i32) {
    %c0_i32 = arith.constant 0 : i32
    %c0_i32_0 = arith.constant 0 : i32
    %c0_i32_1 = arith.constant 0 : i32
    return %c0_i32, %c0_i32_0 : i32, i32
  }
  func.func @transform_7(%arg0: i32) -> (i32, i32) {
    %c0_i32 = arith.constant 0 : i32
    %c0_i32_0 = arith.constant 0 : i32
    %c0_i32_1 = arith.constant 0 : i32
    return %c0_i32, %c0_i32_0 : i32, i32
  }
  func.func @transform_8(%arg0: i32) -> (i32, i32) {
    %c0_i32 = arith.constant 0 : i32
    %c0_i32_0 = arith.constant 0 : i32
    %c0_i32_1 = arith.constant 0 : i32
    return %c0_i32, %c0_i32_0 : i32, i32
  }
  func.func @transform_9(%arg0: i32) -> (i32, i32) {
    %c0_i32 = arith.constant 0 : i32
    %c0_i32_0 = arith.constant 0 : i32
    return %arg0, %c0_i32 : i32, i32
  }
}

</mosaic_0001>

<llo_original>
// kernel: tpu_custom_call.1
$region0: #{tpu_custom_call.1}
  #allocation0 [shape = 'u32[]', space=smem, size = 0x4, offset = 0x4, fixed_abs, tag = 'smem constant byte address 0x4 - core index']
  #allocation1 [shape = 'u32[144,128]{1,0:T(1,128)}', space=vmem, size = 0x12000, scoped, tag = 'internal scratch']
  %s0 = inlined_call_operand.vmem [shape: f32[2,8], index: 0, kind: input, shape index: {}]
  %s1 = inlined_call_operand.vmem [shape: f32[8,128], index: 1, kind: input, shape index: {}]
  %s2 = inlined_call_operand.vmem [shape: f32[1,128], index: 2, kind: input, shape index: {}]
  %s3 = inlined_call_operand.vmem [shape: bf16[128,128], index: 3, kind: input, shape index: {}]
  %s4 = inlined_call_operand.vmem [shape: f32[1,128], index: 4, kind: input, shape index: {}]
  %s5 = inlined_call_operand.hbm [shape: bf16[128,128], index: 5, kind: input, shape index: {}]
  %s6 = inlined_call_operand.vmem [shape: f32[1,128], index: 6, kind: input, shape index: {}]
  %s7 = inlined_call_operand.vmem [shape: bf16[128,4], index: 7, kind: input, shape index: {}]
  %s8 = inlined_call_operand.vmem [shape: f32[1,4], index: 8, kind: input, shape index: {}]
  %s9 = inlined_call_operand.hbm [shape: f32[2,4], index: 9, kind: output, shape index: {}]
  %s10 = sld [smem:[#allocation0]]
  $region50: #{tpu_custom_call.1} parent=0
    _
  %s12 = ssub.s32 1, %s10
  %s13 = scalar_select 0, %s12, %s10
  $region1: #{tpu_custom_call.1} parent=0
    #allocation2 [shape = 'u8[32768]{0}', space=vmem, size = 0x8000, scoped, tag = 'input window, operand 5, single buffered']
    #allocation3 [shape = 's32[1]{0}', space=sflag, size = 0x4, scoped, tag = 'scoped memory for tpu_custom_call.1']
    #allocation4 [shape = 's32[1]{0}', space=sflag, size = 0x4, scoped, tag = 'scoped memory for tpu_custom_call.1']
    #allocation5 [shape = 'u8[1024]{0}', space=vmem, size = 0x400, scoped, tag = 'output window, operand 0, single buffered']
    %14 = vsyncpa [#allocation3], 0
    %15 = vsyncpa [#allocation4], 0
    // Predicated region
    $region2: #{tpu_custom_call.1} parent=1 // pred_check
      _
    $region3: #{tpu_custom_call.1} parent=1 // pred_check_branch
      %17 = sbr.rel (0) target = $region5
    $region4: #{tpu_custom_call.1} parent=1 // pred_region
      _
    $region5: #{tpu_custom_call.1} parent=1 // pred_fallthru
      _
    // Predicated region
    $region6: #{tpu_custom_call.1} parent=1 // pred_check
      _
    $region7: #{tpu_custom_call.1} parent=1 // pred_check_branch
      %19 = sbr.rel (0) target = $region9
    $region8: #{tpu_custom_call.1} parent=1 // pred_region
      _
    $region9: #{tpu_custom_call.1} parent=1 // pred_fallthru
      _
    // Predicated region
    $region10: #{tpu_custom_call.1} parent=1 // pred_check
      _
    $region11: #{tpu_custom_call.1} parent=1 // pred_check_branch
      %21 = sbr.rel (0) target = $region13
    $region12: #{tpu_custom_call.1} parent=1 // pred_region
      _
    $region13: #{tpu_custom_call.1} parent=1 // pred_fallthru
      _
    // Predicated region
    $region14: #{tpu_custom_call.1} parent=1 // pred_check
      _
    $region15: #{tpu_custom_call.1} parent=1 // pred_check_branch
      %23 = sbr.rel (0) target = $region17
    $region16: #{tpu_custom_call.1} parent=1 // pred_region
      _
    $region17: #{tpu_custom_call.1} parent=1 // pred_fallthru
      _
    // Predicated region
    $region18: #{tpu_custom_call.1} parent=1 // pred_check
      _
    $region19: #{tpu_custom_call.1} parent=1 // pred_check_branch
      %25 = sbr.rel (0) target = $region21
    $region20: #{tpu_custom_call.1} parent=1 // pred_region
      _
    $region21: #{tpu_custom_call.1} parent=1 // pred_fallthru
      _
    // Predicated region
    $region22: #{tpu_custom_call.1} parent=1 // pred_check
      _
    $region23: #{tpu_custom_call.1} parent=1 // pred_check_branch
      %27 = sbr.rel (0) target = $region25
    $region24: #{tpu_custom_call.1} parent=1 // pred_region
      %s29 = ssub.s32 1024, 1024
      %30 = vsyncadd [#allocation3], %s29
      %s31 = sshll.u32 [#allocation2], 4
      %s32 = int_to_ptr.vmem [resolvable:$true] %s31
      %37 = dma.hbm_to_vmem [thread:$0]  %s5, 1024, %s32, [#allocation3], 64, 64, 4
    $region25: #{tpu_custom_call.1} parent=1 // pred_fallthru
      _
    // Predicated region
    $region26: #{tpu_custom_call.1} parent=1 // pred_check
      _
    $region27: #{tpu_custom_call.1} parent=1 // pred_check_branch
      %39 = sbr.rel (0) target = $region29
    $region28: #{tpu_custom_call.1} parent=1 // pred_region
      _
    $region29: #{tpu_custom_call.1} parent=1 // pred_fallthru
      _
    // Predicated region
    $region30: #{tpu_custom_call.1} parent=1 // pred_check
      _
    $region31: #{tpu_custom_call.1} parent=1 // pred_check_branch
      %41 = sbr.rel (0) target = $region33
    $region32: #{tpu_custom_call.1} parent=1 // pred_region
      _
    $region33: #{tpu_custom_call.1} parent=1 // pred_fallthru
      _
    // Predicated region
    $region34: #{tpu_custom_call.1} parent=1 // pred_check
      _
    $region35: #{tpu_custom_call.1} parent=1 // pred_check_branch
      %43 = sbr.rel (0) target = $region37
    $region36: #{tpu_custom_call.1} parent=1 // pred_region
      _
    $region37: #{tpu_custom_call.1} parent=1 // pred_fallthru
      _
    // Predicated region
    $region38: #{tpu_custom_call.1} parent=1 // pred_check
      _
    $region39: #{tpu_custom_call.1} parent=1 // pred_check_branch
      %45 = sbr.rel (0) target = $region41
    $region40: #{tpu_custom_call.1} parent=1 // pred_region
      %46 = dma.done [#allocation3], 1024
    $region41: #{tpu_custom_call.1} parent=1 // pred_fallthru
      _
    %v48 = vld [vmem:[%s0] sm:$0x3]
    %v49 = vld [vmem:[%s1] sm:$0xff]
    %v50 = vld [vmem:[%s2] sm:$0x1]
    %v52 = vlaneseq
    %v53 = vshrl.u32 %v52, 7
    %v54 = vsub.s32 0, %v53
    %v55 = vrot.slane %v50, %v54
    %vm57 = vcmask 64512
    %v59 = vsel %vm57, %v48, 0
    %61 = vmatprep.subr.mxu0 0.0
    %62 = vmatpush1.msra.mxu0 %v49
    %63 = vmatprep.subr.mxu0 0.0
    %64 = vmatpush1.msra.mxu0 0.0
    %65 = vmatprep.subr.mxu0 0.0
    %66 = vmatpush1.msra.mxu0 0.0
    %67 = vmatprep.subr.mxu0 0.0
    %68 = vmatpush1.msra.mxu0 0.0
    %69 = vmatprep.subr.mxu0 0.0
    %70 = vmatpush1.msra.mxu0 0.0
    %71 = vmatprep.subr.mxu0 0.0
    %72 = vmatpush1.msra.mxu0 0.0
    %73 = vmatprep.subr.mxu0 0.0
    %74 = vmatpush1.msra.mxu0 0.0
    %75 = vmatprep.subr.mxu0 0.0
    %76 = vmatpush1.msra.mxu0 0.0
    %77 = vmatprep.subr.mxu0 0.0
    %78 = vmatpush1.msra.mxu0 0.0
    %79 = vmatprep.subr.mxu0 0.0
    %80 = vmatpush1.msra.mxu0 0.0
    %81 = vmatprep.subr.mxu0 0.0
    %82 = vmatpush1.msra.mxu0 0.0
    %83 = vmatprep.subr.mxu0 0.0
    %84 = vmatpush1.msra.mxu0 0.0
    %85 = vmatprep.subr.mxu0 0.0
    %86 = vmatpush1.msra.mxu0 0.0
    %87 = vmatprep.subr.mxu0 0.0
    %88 = vmatpush1.msra.mxu0 0.0
    %89 = vmatprep.subr.mxu0 0.0
    %90 = vmatpush1.msra.mxu0 0.0
    %91 = vmatprep.subr.mxu0 0.0
    %92 = vmatpush1.msra.mxu0 0.0
    %93 = vmatprep.subr.mxu0 0.0
    %94 = vmatpush1.msra.mxu0 0.0
    %95 = vmatprep.subr.mxu0 0.0
    %96 = vmatpush1.msra.mxu0 0.0
    %97 = vmatprep.subr.mxu0 0.0
    %98 = vmatpush1.msra.mxu0 0.0
    %99 = vmatprep.subr.mxu0 0.0
    %100 = vmatpush1.msra.mxu0 0.0
    %101 = vmatprep.subr.mxu0 0.0
    %102 = vmatpush1.msra.mxu0 0.0
    %103 = vmatprep.subr.mxu0 0.0
    %104 = vmatpush1.msra.mxu0 0.0
    %105 = vmatprep.subr.mxu0 0.0
    %106 = vmatpush1.msra.mxu0 0.0
    %107 = vmatprep.subr.mxu0 0.0
    %108 = vmatpush1.msra.mxu0 0.0
    %109 = vmatprep.subr.mxu0 0.0
    %110 = vmatpush1.msra.mxu0 0.0
    %111 = vmatprep.subr.mxu0 0.0
    %112 = vmatpush1.msra.mxu0 0.0
    %113 = vmatprep.subr.mxu0 0.0
    %114 = vmatpush1.msra.mxu0 0.0
    %115 = vmatprep.subr.mxu0 0.0
    %116 = vmatpush1.msra.mxu0 0.0
    %117 = vmatprep.subr.mxu0 0.0
    %118 = vmatpush1.msra.mxu0 0.0
    %119 = vmatprep.subr.mxu0 0.0
    %120 = vmatpush1.msra.mxu0 0.0
    %121 = vmatprep.subr.mxu0 0.0
    %122 = vmatpush1.msra.mxu0 0.0
    %123 = vmatprep.subr.mxu0 0.0
    %124 = vmatpush1.msra.mxu0 0.0
    %125 = vmatprep.mubr.f32.mxu0 0.0
    %126 = vmatmul.mubr.f32.gmra.mrb[0].mxu0 %v59
    %v127 = vpop.f32.mrb[0].mxu0
    %v128 = vadd.f32 %v55, %v127
    %v129 = vpop.f32.mrb[0].mxu0
    %130 = vdwg.mxu0
    %v131 = vpack.c.bf16 %v128, %v128
    %v132 = vmax.bf16 %v131, 0
    %v133 = vld [vmem:[%s3] sm:$0xf]
    %v134 = vld [vmem:[%s3 + $0x4] sm:$0xf]
    %v135 = vld [vmem:[%s3 + $0x8] sm:$0xf]
    %v136 = vld [vmem:[%s3 + $0xc] sm:$0xf]
    %v137 = vld [vmem:[%s3 + $0x10] sm:$0xf]
    %v138 = vld [vmem:[%s3 + $0x14] sm:$0xf]
    %v139 = vld [vmem:[%s3 + $0x18] sm:$0xf]
    %v140 = vld [vmem:[%s3 + $0x1c] sm:$0xf]
    %v141 = vld [vmem:[%s3 + $0x20] sm:$0xf]
    %v142 = vld [vmem:[%s3 + $0x24] sm:$0xf]
    %v143 = vld [vmem:[%s3 + $0x28] sm:$0xf]
    %v144 = vld [vmem:[%s3 + $0x2c] sm:$0xf]
    %v145 = vld [vmem:[%s3 + $0x30] sm:$0xf]
    %v146 = vld [vmem:[%s3 + $0x34] sm:$0xf]
    %v147 = vld [vmem:[%s3 + $0x38] sm:$0xf]
    %v148 = vld [vmem:[%s3 + $0x3c] sm:$0xf]
    %v149 = vld [vmem:[%s4] sm:$0x1]
    %v151 = vlaneseq
    %v152 = vshrl.u32 %v151, 7
    %v153 = vsub.s32 0, %v152
    %v154 = vrot.slane %v149, %v153
    %v172 = vunpack.c.l.b16 %v133
    %v173 = vunpack.c.l.b16 %v134
    %v174 = vunpack.c.l.b16 %v135
    %v175 = vunpack.c.l.b16 %v136
    %v176 = vunpack.c.l.b16 %v137
    %v177 = vunpack.c.l.b16 %v138
    %v178 = vunpack.c.l.b16 %v139
    %v179 = vunpack.c.l.b16 %v140
    %v180 = vunpack.c.l.b16 %v141
    %v181 = vunpack.c.l.b16 %v142
    %v182 = vunpack.c.l.b16 %v143
    %v183 = vunpack.c.l.b16 %v144
    %v184 = vunpack.c.l.b16 %v145
    %v185 = vunpack.c.l.b16 %v146
    %v186 = vunpack.c.l.b16 %v147
    %v187 = vunpack.c.l.b16 %v148
    %v188 = vpack.c.b16 %v173, %v172
    %v189 = vpack.c.b16 %v175, %v174
    %v190 = vpack.c.b16 %v177, %v176
    %v191 = vpack.c.b16 %v179, %v178
    %v192 = vpack.c.b16 %v181, %v180
    %v193 = vpack.c.b16 %v183, %v182
    %v194 = vpack.c.b16 %v185, %v184
    %v195 = vpack.c.b16 %v187, %v186
    %204 = vmatprep.subr.bf16.mxu0 0
    %205 = vmatpush1.bf16.msra.mxu0 %v188
    %206 = vmatprep.subr.bf16.mxu0 0
    %207 = vmatpush1.bf16.msra.mxu0 %v189
    %208 = vmatprep.subr.bf16.mxu0 0
    %209 = vmatpush1.bf16.msra.mxu0 %v190
    %210 = vmatprep.subr.bf16.mxu0 0
    %211 = vmatpush1.bf16.msra.mxu0 %v191
    %212 = vmatprep.subr.bf16.mxu0 0
    %213 = vmatpush1.bf16.msra.mxu0 %v192
    %214 = vmatprep.subr.bf16.mxu0 0
    %215 = vmatpush1.bf16.msra.mxu0 %v193
    %216 = vmatprep.subr.bf16.mxu0 0
    %217 = vmatpush1.bf16.msra.mxu0 %v194
    %218 = vmatprep.subr.bf16.mxu0 0
    %219 = vmatpush1.bf16.msra.mxu0 %v195
    %220 = vmatprep.subr.bf16.mxu0 0
    %221 = vmatpush1.bf16.msra.mxu0 0
    %222 = vmatprep.subr.bf16.mxu0 0
    %223 = vmatpush1.bf16.msra.mxu0 0
    %224 = vmatprep.subr.bf16.mxu0 0
    %225 = vmatpush1.bf16.msra.mxu0 0
    %226 = vmatprep.subr.bf16.mxu0 0
    %227 = vmatpush1.bf16.msra.mxu0 0
    %228 = vmatprep.subr.bf16.mxu0 0
    %229 = vmatpush1.bf16.msra.mxu0 0
    %230 = vmatprep.subr.bf16.mxu0 0
    %231 = vmatpush1.bf16.msra.mxu0 0
    %232 = vmatprep.subr.bf16.mxu0 0
    %233 = vmatpush1.bf16.msra.mxu0 0
    %234 = vmatprep.subr.bf16.mxu0 0
    %235 = vmatpush1.bf16.msra.mxu0 0
    %236 = vmatprep.mubr.bf16.mxu0 0
    %237 = vmatmul.mubr.bf16.gmra.mrb[0].mxu0 %v132
    %v238 = vpop.f32.mrb[0].mxu0
    %v239 = vadd.f32 %v154, %v238
    %v240 = vpop.f32.mrb[0].mxu0
    %v241 = vpop.f32.mrb[0].mxu0
    %v242 = vpop.f32.mrb[0].mxu0
    %243 = vdwg.mxu0
    %v244 = vpack.c.bf16 %v239, %v239
    %v245 = vmax.bf16 %v244, 0
    %v246 = vld [vmem:[#allocation2] sm:$0xf]
    %v247 = vld [vmem:[#allocation2 + $0x4] sm:$0xf]
    %v248 = vld [vmem:[#allocation2 + $0x8] sm:$0xf]
    %v249 = vld [vmem:[#allocation2 + $0xc] sm:$0xf]
    %v250 = vld [vmem:[#allocation2 + $0x10] sm:$0xf]
    %v251 = vld [vmem:[#allocation2 + $0x14] sm:$0xf]
    %v252 = vld [vmem:[#allocation2 + $0x18] sm:$0xf]
    %v253 = vld [vmem:[#allocation2 + $0x1c] sm:$0xf]
    %v254 = vld [vmem:[#allocation2 + $0x20] sm:$0xf]
    %v255 = vld [vmem:[#allocation2 + $0x24] sm:$0xf]
    %v256 = vld [vmem:[#allocation2 + $0x28] sm:$0xf]
    %v257 = vld [vmem:[#allocation2 + $0x2c] sm:$0xf]
    %v258 = vld [vmem:[#allocation2 + $0x30] sm:$0xf]
    %v259 = vld [vmem:[#allocation2 + $0x34] sm:$0xf]
    %v260 = vld [vmem:[#allocation2 + $0x38] sm:$0xf]
    %v261 = vld [vmem:[#allocation2 + $0x3c] sm:$0xf]
    %v262 = vld [vmem:[%s6] sm:$0x1]
    %v264 = vlaneseq
    %v265 = vshrl.u32 %v264, 7
    %v266 = vsub.s32 0, %v265
    %v267 = vrot.slane %v262, %v266
    %v285 = vunpack.c.l.b16 %v246
    %v286 = vunpack.c.l.b16 %v247
    %v287 = vunpack.c.l.b16 %v248
    %v288 = vunpack.c.l.b16 %v249
    %v289 = vunpack.c.l.b16 %v250
    %v290 = vunpack.c.l.b16 %v251
    %v291 = vunpack.c.l.b16 %v252
    %v292 = vunpack.c.l.b16 %v253
    %v293 = vunpack.c.l.b16 %v254
    %v294 = vunpack.c.l.b16 %v255
    %v295 = vunpack.c.l.b16 %v256
    %v296 = vunpack.c.l.b16 %v257
    %v297 = vunpack.c.l.b16 %v258
    %v298 = vunpack.c.l.b16 %v259
    %v299 = vunpack.c.l.b16 %v260
    %v300 = vunpack.c.l.b16 %v261
    %v301 = vpack.c.b16 %v286, %v285
    %v302 = vpack.c.b16 %v288, %v287
    %v303 = vpack.c.b16 %v290, %v289
    %v304 = vpack.c.b16 %v292, %v291
    %v305 = vpack.c.b16 %v294, %v293
    %v306 = vpack.c.b16 %v296, %v295
    %v307 = vpack.c.b16 %v298, %v297
    %v308 = vpack.c.b16 %v300, %v299
    %317 = vmatprep.subr.bf16.mxu0 0
    %318 = vmatpush1.bf16.msra.mxu0 %v301
    %319 = vmatprep.subr.bf16.mxu0 0
    %320 = vmatpush1.bf16.msra.mxu0 %v302
    %321 = vmatprep.subr.bf16.mxu0 0
    %322 = vmatpush1.bf16.msra.mxu0 %v303
    %323 = vmatprep.subr.bf16.mxu0 0
    %324 = vmatpush1.bf16.msra.mxu0 %v304
    %325 = vmatprep.subr.bf16.mxu0 0
    %326 = vmatpush1.bf16.msra.mxu0 %v305
    %327 = vmatprep.subr.bf16.mxu0 0
    %328 = vmatpush1.bf16.msra.mxu0 %v306
    %329 = vmatprep.subr.bf16.mxu0 0
    %330 = vmatpush1.bf16.msra.mxu0 %v307
    %331 = vmatprep.subr.bf16.mxu0 0
    %332 = vmatpush1.bf16.msra.mxu0 %v308
    %333 = vmatprep.subr.bf16.mxu0 0
    %334 = vmatpush1.bf16.msra.mxu0 0
    %335 = vmatprep.subr.bf16.mxu0 0
    %336 = vmatpush1.bf16.msra.mxu0 0
    %337 = vmatprep.subr.bf16.mxu0 0
    %338 = vmatpush1.bf16.msra.mxu0 0
    %339 = vmatprep.subr.bf16.mxu0 0
    %340 = vmatpush1.bf16.msra.mxu0 0
    %341 = vmatprep.subr.bf16.mxu0 0
    %342 = vmatpush1.bf16.msra.mxu0 0
    %343 = vmatprep.subr.bf16.mxu0 0
    %344 = vmatpush1.bf16.msra.mxu0 0
    %345 = vmatprep.subr.bf16.mxu0 0
    %346 = vmatpush1.bf16.msra.mxu0 0
    %347 = vmatprep.subr.bf16.mxu0 0
    %348 = vmatpush1.bf16.msra.mxu0 0
    %349 = vmatprep.mubr.bf16.mxu0 0
    %350 = vmatmul.mubr.bf16.gmra.mrb[0].mxu0 %v245
    %v351 = vpop.f32.mrb[0].mxu0
    %v352 = vadd.f32 %v267, %v351
    %v353 = vpop.f32.mrb[0].mxu0
    %v354 = vpop.f32.mrb[0].mxu0
    %v355 = vpop.f32.mrb[0].mxu0
    %356 = vdwg.mxu0
    %v357 = vpack.c.bf16 %v352, %v352
    %v358 = vmax.bf16 %v357, 0
    %v359 = vld [vmem:[%s7] sm:$0xf]
    %v360 = vld [vmem:[%s7 + $0x4] sm:$0xf]
    %v361 = vld [vmem:[%s7 + $0x8] sm:$0xf]
    %v362 = vld [vmem:[%s7 + $0xc] sm:$0xf]
    %v363 = vld [vmem:[%s7 + $0x10] sm:$0xf]
    %v364 = vld [vmem:[%s7 + $0x14] sm:$0xf]
    %v365 = vld [vmem:[%s7 + $0x18] sm:$0xf]
    %v366 = vld [vmem:[%s7 + $0x1c] sm:$0xf]
    %v367 = vld [vmem:[%s7 + $0x20] sm:$0xf]
    %v368 = vld [vmem:[%s7 + $0x24] sm:$0xf]
    %v369 = vld [vmem:[%s7 + $0x28] sm:$0xf]
    %v370 = vld [vmem:[%s7 + $0x2c] sm:$0xf]
    %v371 = vld [vmem:[%s7 + $0x30] sm:$0xf]
    %v372 = vld [vmem:[%s7 + $0x34] sm:$0xf]
    %v373 = vld [vmem:[%s7 + $0x38] sm:$0xf]
    %v374 = vld [vmem:[%s7 + $0x3c] sm:$0xf]
    %v375 = vld [vmem:[%s8] sm:$0x1]
    %v377 = vlaneseq
    %v378 = vshrl.u32 %v377, 7
    %v379 = vsub.s32 0, %v378
    %v380 = vrot.slane %v375, %v379
    %v398 = vunpack.c.l.b16 %v359
    %v399 = vunpack.c.l.b16 %v360
    %v400 = vunpack.c.l.b16 %v361
    %v401 = vunpack.c.l.b16 %v362
    %v402 = vunpack.c.l.b16 %v363
    %v403 = vunpack.c.l.b16 %v364
    %v404 = vunpack.c.l.b16 %v365
    %v405 = vunpack.c.l.b16 %v366
    %v406 = vunpack.c.l.b16 %v367
    %v407 = vunpack.c.l.b16 %v368
    %v408 = vunpack.c.l.b16 %v369
    %v409 = vunpack.c.l.b16 %v370
    %v410 = vunpack.c.l.b16 %v371
    %v411 = vunpack.c.l.b16 %v372
    %v412 = vunpack.c.l.b16 %v373
    %v413 = vunpack.c.l.b16 %v374
    %v414 = vpack.c.b16 %v399, %v398
    %v415 = vpack.c.b16 %v401, %v400
    %v416 = vpack.c.b16 %v403, %v402
    %v417 = vpack.c.b16 %v405, %v404
    %v418 = vpack.c.b16 %v407, %v406
    %v419 = vpack.c.b16 %v409, %v408
    %v420 = vpack.c.b16 %v411, %v410
    %v421 = vpack.c.b16 %v413, %v412
    %430 = vmatprep.subr.bf16.mxu0 0
    %431 = vmatpush1.bf16.msra.mxu0 %v414
    %432 = vmatprep.subr.bf16.mxu0 0
    %433 = vmatpush1.bf16.msra.mxu0 %v415
    %434 = vmatprep.subr.bf16.mxu0 0
    %435 = vmatpush1.bf16.msra.mxu0 %v416
    %436 = vmatprep.subr.bf16.mxu0 0
    %437 = vmatpush1.bf16.msra.mxu0 %v417
    %438 = vmatprep.subr.bf16.mxu0 0
    %439 = vmatpush1.bf16.msra.mxu0 %v418
    %440 = vmatprep.subr.bf16.mxu0 0
    %441 = vmatpush1.bf16.msra.mxu0 %v419
    %442 = vmatprep.subr.bf16.mxu0 0
    %443 = vmatpush1.bf16.msra.mxu0 %v420
    %444 = vmatprep.subr.bf16.mxu0 0
    %445 = vmatpush1.bf16.msra.mxu0 %v421
    %446 = vmatprep.subr.bf16.mxu0 0
    %447 = vmatpush1.bf16.msra.mxu0 0
    %448 = vmatprep.subr.bf16.mxu0 0
    %449 = vmatpush1.bf16.msra.mxu0 0
    %450 = vmatprep.subr.bf16.mxu0 0
    %451 = vmatpush1.bf16.msra.mxu0 0
    %452 = vmatprep.subr.bf16.mxu0 0
    %453 = vmatpush1.bf16.msra.mxu0 0
    %454 = vmatprep.subr.bf16.mxu0 0
    %455 = vmatpush1.bf16.msra.mxu0 0
    %456 = vmatprep.subr.bf16.mxu0 0
    %457 = vmatpush1.bf16.msra.mxu0 0
    %458 = vmatprep.subr.bf16.mxu0 0
    %459 = vmatpush1.bf16.msra.mxu0 0
    %460 = vmatprep.subr.bf16.mxu0 0
    %461 = vmatpush1.bf16.msra.mxu0 0
    %462 = vmatprep.mubr.bf16.mxu0 0
    %463 = vmatmul.mubr.bf16.gmra.mrb[0].mxu0 %v358
    %v464 = vpop.f32.mrb[0].mxu0
    %v465 = vadd.f32 %v380, %v464
    %v466 = vpop.f32.mrb[0].mxu0
    %v467 = vpop.f32.mrb[0].mxu0
    %v468 = vpop.f32.mrb[0].mxu0
    %469 = vdwg.mxu0
    %vm470 = vcmask 25600
    %471 = vst.msk [vmem:[#allocation5] sm:$0x3] %vm470, %v465
    // Predicated region
    $region42: #{tpu_custom_call.1} parent=1 // pred_check
      _
    $region43: #{tpu_custom_call.1} parent=1 // pred_check_branch
      %473 = sbr.rel (0) target = $region45
    $region44: #{tpu_custom_call.1} parent=1 // pred_region
      %s475 = ssub.s32 32, 32
      %476 = vsyncadd [#allocation4], %s475
      %s478 = sshll.u32 [#allocation5], 4
      %s479 = int_to_ptr.vmem [resolvable:$true] %s478
      %481 = dma.vmem_to_hbm [thread:$0]  %s479, 32, %s9, [#allocation4]
    $region45: #{tpu_custom_call.1} parent=1 // pred_fallthru
      _
    // Predicated region
    $region46: #{tpu_custom_call.1} parent=1 // pred_check
      _
    $region47: #{tpu_custom_call.1} parent=1 // pred_check_branch
      %483 = sbr.rel (0) target = $region49
    $region48: #{tpu_custom_call.1} parent=1 // pred_region
      %484 = dma.done [#allocation4], 32
    $region49: #{tpu_custom_call.1} parent=1 // pred_fallthru
      _
    %485 = vsyncpa [#allocation3], 1
    %486 = vsyncpa [#allocation4], 1

</llo_original>
